<compile_context>
chip_gen: v5e
topology: v5e:2x2
jax: 0.10.0
libtpu: 0.0.40
codegen_flags: <defaults>
</compile_context>

<pallas_src>
import functools

import jax
import jax.numpy as jnp
from jax.experimental import pallas as pl
from jax.experimental.pallas import tpu as pltpu


def _round_up(x, m):
    return (x + m - 1) // m * m


def _mha_kernel(x_ref, wc_ref, bc_ref, w2_ref, b2_ref, o_ref):
    # x_ref:  (TM, Hp)  activation tile (compute dtype, e.g. bf16)
    # wc_ref: (Hp, Hp)  stacked per-head projection weights (transposed, compute dtype)
    # bc_ref: (1, Hp)   concatenated per-head biases (f32)
    # w2_ref: (Hp, Hp)  output linear weight (transposed, compute dtype)
    # b2_ref: (1, Hp)   output linear bias (f32)
    # o_ref:  (TM, Hp)  output tile (output dtype)
    x = x_ref[...]
    # Per-head projections + concat, fused into one matmul (f32 accumulation).
    concat = jnp.dot(x, wc_ref[...], preferred_element_type=jnp.float32)
    concat = concat + bc_ref[...]                       # bias add in f32
    # Final output linear (cast intermediate back to compute dtype for MXU).
    out = jnp.dot(concat.astype(w2_ref.dtype), w2_ref[...],
                  preferred_element_type=jnp.float32)
    out = out + b2_ref[...]                             # bias add in f32
    o_ref[...] = out.astype(o_ref.dtype)


@functools.partial(jax.jit, static_argnames=("num_heads", "compute_dtype"))
def multi_head_attention(encoder_outputs, head_weights, head_biases,
                         out_weight, out_bias, *, num_heads,
                         compute_dtype=jnp.bfloat16):
    """
    encoder_outputs: (B, S, H) float32
    head_weights:    (num_heads, head_dim, H)  -- PyTorch Linear weight layout per head
    head_biases:     (num_heads, head_dim)
    out_weight:      (H, H)                    -- PyTorch Linear weight layout
    out_bias:        (H,)
    """
    B, S, H = encoder_outputs.shape
    out_dtype = encoder_outputs.dtype

    # Fused "concat of heads" weight, built with one reshape + transpose
    # (no Python loop of per-head transposes + concat):
    #   head_weights.reshape(H, H) stacks W_0; W_1; ... row-wise,
    #   transposing gives column block j == W_j^T, matching torch.cat(dim=2).
    wc = head_weights.reshape(H, H).T               # (H, H)
    bc = head_biases.reshape(1, H)                  # (1, H)
    w2 = out_weight.T                               # (H, H)
    b2 = out_bias.reshape(1, H)                     # (1, H)

    M = B * S
    x2d = encoder_outputs.reshape(M, H)

    # Lane-dense / sublane-dense padded shapes.
    Hp = max(_round_up(H, 128), 128)
    TM = min(256, _round_up(M, 8))                  # token-tile, multiple of 8
    Mp = _round_up(M, TM)

    cdt = jnp.dtype(compute_dtype)

    if Hp == H and Mp == M:
        x_p = x2d.astype(cdt)
        wc_p = wc.astype(cdt)
        w2_p = w2.astype(cdt)
        bc_p = bc.astype(jnp.float32)
        b2_p = b2.astype(jnp.float32)
    else:
        # Zero padding is inert: padded x columns hit padded (zero) wc rows,
        # padded concat columns carry zero bias and hit zero w2 rows, and the
        # padded output columns/rows are sliced off below.
        x_p = jnp.zeros((Mp, Hp), cdt).at[:M, :H].set(x2d.astype(cdt))
        wc_p = jnp.zeros((Hp, Hp), cdt).at[:H, :H].set(wc.astype(cdt))
        w2_p = jnp.zeros((Hp, Hp), cdt).at[:H, :H].set(w2.astype(cdt))
        bc_p = jnp.zeros((1, Hp), jnp.float32).at[:, :H].set(bc.astype(jnp.float32))
        b2_p = jnp.zeros((1, Hp), jnp.float32).at[:, :H].set(b2.astype(jnp.float32))

    grid = (Mp // TM,)

    # VMEM budget: resident weights/biases + double-buffered x/out tiles,
    # with headroom; capped so it fits v7x's 64 MiB physical VMEM.
    c_item = cdt.itemsize
    o_item = jnp.dtype(out_dtype).itemsize
    vmem_bytes = 2 * (
        2 * Hp * Hp * c_item          # wc, w2
        + 2 * Hp * 4                  # bc, b2 (f32)
        + TM * Hp * c_item            # x tile
        + TM * Hp * o_item            # out tile
    )
    vmem_limit = int(min(max(vmem_bytes + (4 << 20), 32 << 20), 64 << 20))

    cost = pl.CostEstimate(
        flops=2 * 2 * M * H * H,
        transcendentals=0,
        bytes_accessed=o_item * M * H + c_item * (M * H + 2 * H * H) + 4 * 2 * H,
    )

    out2d = pl.pallas_call(
        _mha_kernel,
        out_shape=jax.ShapeDtypeStruct((Mp, Hp), out_dtype),
        grid=grid,
        in_specs=[
            pl.BlockSpec((TM, Hp), lambda i: (i, 0)),   # x: tiled over tokens
            pl.BlockSpec((Hp, Hp), lambda i: (0, 0)),   # wc: resident
            pl.BlockSpec((1, Hp), lambda i: (0, 0)),    # bc: resident
            pl.BlockSpec((Hp, Hp), lambda i: (0, 0)),   # w2: resident
            pl.BlockSpec((1, Hp), lambda i: (0, 0)),    # b2: resident
        ],
        out_specs=pl.BlockSpec((TM, Hp), lambda i: (i, 0)),
        compiler_params=pltpu.CompilerParams(
            dimension_semantics=("parallel",),
            vmem_limit_bytes=vmem_limit,
        ),
        cost_estimate=cost,
    )(x_p, wc_p, bc_p, w2_p, b2_p)

    return out2d[:M, :H].reshape(B, S, H)


def _reference(encoder_outputs, head_weights, head_biases, out_weight, out_bias,
               num_heads):
    """Pure-JAX reference mirroring the PyTorch forward exactly (f32)."""
    head_outs = []
    for j in range(num_heads):
        y = encoder_outputs @ head_weights[j].T + head_biases[j]
        head_outs.append(y)
    concat = jnp.concatenate(head_outs, axis=2)
    return concat @ out_weight.T + out_bias


if __name__ == "__main__":
    # Small, module-consistent shapes.
    batch, seq, hidden, num_heads = 2, 8, 32, 4
    head_dim = hidden // num_heads

    key = jax.random.PRNGKey(0)
    k_x, k_hw, k_hb, k_ow, k_ob = jax.random.split(key, 5)

    x = jax.random.normal(k_x, (batch, seq, hidden), dtype=jnp.float32)
    # Deterministic synthetic params matching nn.Linear shapes.
    head_w = jax.random.normal(k_hw, (num_heads, head_dim, hidden), dtype=jnp.float32) * 0.1
    head_b = jax.random.normal(k_hb, (num_heads, head_dim), dtype=jnp.float32) * 0.1
    out_w = jax.random.normal(k_ow, (hidden, hidden), dtype=jnp.float32) * 0.1
    out_b = jax.random.normal(k_ob, (hidden,), dtype=jnp.float32) * 0.1

    ref = _reference(x, head_w, head_b, out_w, out_b, num_heads)

    # Default fast path: bf16 MXU matmuls with f32 accumulation.
    out_bf16 = multi_head_attention(x, head_w, head_b, out_w, out_b,
                                    num_heads=num_heads)
    out_bf16 = jax.block_until_ready(out_bf16)
    assert out_bf16.shape == (batch, seq, hidden)
    assert jnp.allclose(out_bf16, ref, atol=2e-2, rtol=2e-2), \
        "bf16-compute mismatch vs reference"

    # Full-precision path (same kernel, f32 compute) checks exact fused math.
    out_f32 = multi_head_attention(x, head_w, head_b, out_w, out_b,
                                   num_heads=num_heads,
                                   compute_dtype=jnp.float32)
    out_f32 = jax.block_until_ready(out_f32)
    assert jnp.allclose(out_f32, ref, atol=1e-4, rtol=1e-4), \
        "f32-compute mismatch vs reference"

    print("KERNEL_OK")
</pallas_src>

<mosaic_0001>
module attributes {stable_mosaic.version = 11 : i64} {
  func.func @_mha_kernel(%arg0: i32, %arg1: memref<16x128xbf16, #tpu.memory_space<vmem>>, %arg2: memref<128x128xbf16, #tpu.memory_space<vmem>>, %arg3: memref<1x128xf32, #tpu.memory_space<vmem>>, %arg4: memref<128x128xbf16, #tpu.memory_space<vmem>>, %arg5: memref<1x128xf32, #tpu.memory_space<vmem>>, %arg6: memref<16x128xf32, #tpu.memory_space<vmem>>) attributes {dimension_semantics = [#tpu.dimension_semantics<parallel>], iteration_bounds = array<i64: 1>, scalar_prefetch = 0 : i64, scratch_operands = 0 : i64, tpu.core_type = #tpu.core_type<tc>, window_params = [{transform_indices = @transform_0, window_bounds = array<i64: 16, 128>}, {pipeline_mode = #tpu.pipeline_mode<synchronous>, transform_indices = @transform_1, window_bounds = array<i64: 128, 128>}, {pipeline_mode = #tpu.pipeline_mode<synchronous>, transform_indices = @transform_2, window_bounds = array<i64: 1, 128>}, {pipeline_mode = #tpu.pipeline_mode<synchronous>, transform_indices = @transform_3, window_bounds = array<i64: 128, 128>}, {pipeline_mode = #tpu.pipeline_mode<synchronous>, transform_indices = @transform_4, window_bounds = array<i64: 1, 128>}, {transform_indices = @transform_5, window_bounds = array<i64: 16, 128>}]} {
    %c0 = arith.constant 0 : index
    %c0_0 = arith.constant 0 : index
    %0 = vector.load %arg1[%c0, %c0_0] : memref<16x128xbf16, #tpu.memory_space<vmem>>, vector<16x128xbf16>
    %c0_1 = arith.constant 0 : index
    %c0_2 = arith.constant 0 : index
    %1 = vector.load %arg2[%c0_1, %c0_2] : memref<128x128xbf16, #tpu.memory_space<vmem>>, vector<128x128xbf16>
    %cst = arith.constant dense<0.000000e+00> : vector<16x128xf32>
    %2 = tpu.matmul %0, %1, %cst {dimension_numbers = #tpu.dot_dimension_numbers<[1], [0], [0], [1], [0, 0, 1, 1], [], []>} : vector<16x128xbf16>, vector<128x128xbf16>, vector<16x128xf32> -> vector<16x128xf32>
    %c0_3 = arith.constant 0 : index
    %c0_4 = arith.constant 0 : index
    %3 = vector.load %arg3[%c0_3, %c0_4] : memref<1x128xf32, #tpu.memory_space<vmem>>, vector<1x128xf32>
    %4 = vector.broadcast %3 : vector<1x128xf32> to vector<16x128xf32>
    %5 = arith.addf %2, %4 : vector<16x128xf32>
    %6 = arith.truncf %5 : vector<16x128xf32> to vector<16x128xbf16>
    %c0_5 = arith.constant 0 : index
    %c0_6 = arith.constant 0 : index
    %7 = vector.load %arg4[%c0_5, %c0_6] : memref<128x128xbf16, #tpu.memory_space<vmem>>, vector<128x128xbf16>
    %cst_7 = arith.constant dense<0.000000e+00> : vector<16x128xf32>
    %8 = tpu.matmul %6, %7, %cst_7 {dimension_numbers = #tpu.dot_dimension_numbers<[1], [0], [0], [1], [0, 0, 1, 1], [], []>} : vector<16x128xbf16>, vector<128x128xbf16>, vector<16x128xf32> -> vector<16x128xf32>
    %c0_8 = arith.constant 0 : index
    %c0_9 = arith.constant 0 : index
    %9 = vector.load %arg5[%c0_8, %c0_9] : memref<1x128xf32, #tpu.memory_space<vmem>>, vector<1x128xf32>
    %10 = vector.broadcast %9 : vector<1x128xf32> to vector<16x128xf32>
    %11 = arith.addf %8, %10 : vector<16x128xf32>
    %c0_10 = arith.constant 0 : index
    %c0_11 = arith.constant 0 : index
    %12 = vector.load %arg6[%c0_10, %c0_11] : memref<16x128xf32, #tpu.memory_space<vmem>>, vector<16x128xf32>
    tpu.vector_store %arg6[%c0_10, %c0_11], %11 {strides = array<i32>} : memref<16x128xf32, #tpu.memory_space<vmem>>, vector<16x128xf32>,
    return
  }
  func.func @transform_0(%arg0: i32) -> (i32, i32) {
    %c0_i32 = arith.constant 0 : i32
    %c0_i32_0 = arith.constant 0 : i32
    return %arg0, %c0_i32 : i32, i32
  }
  func.func @transform_1(%arg0: i32) -> (i32, i32) {
    %c0_i32 = arith.constant 0 : i32
    %c0_i32_0 = arith.constant 0 : i32
    %c0_i32_1 = arith.constant 0 : i32
    return %c0_i32, %c0_i32_0 : i32, i32
  }
  func.func @transform_2(%arg0: i32) -> (i32, i32) {
    %c0_i32 = arith.constant 0 : i32
    %c0_i32_0 = arith.constant 0 : i32
    %c0_i32_1 = arith.constant 0 : i32
    return %c0_i32, %c0_i32_0 : i32, i32
  }
  func.func @transform_3(%arg0: i32) -> (i32, i32) {
    %c0_i32 = arith.constant 0 : i32
    %c0_i32_0 = arith.constant 0 : i32
    %c0_i32_1 = arith.constant 0 : i32
    return %c0_i32, %c0_i32_0 : i32, i32
  }
  func.func @transform_4(%arg0: i32) -> (i32, i32) {
    %c0_i32 = arith.constant 0 : i32
    %c0_i32_0 = arith.constant 0 : i32
    %c0_i32_1 = arith.constant 0 : i32
    return %c0_i32, %c0_i32_0 : i32, i32
  }
  func.func @transform_5(%arg0: i32) -> (i32, i32) {
    %c0_i32 = arith.constant 0 : i32
    %c0_i32_0 = arith.constant 0 : i32
    return %arg0, %c0_i32 : i32, i32
  }
}

</mosaic_0001>

<llo_original>
// kernel: multi_head_attention.1
$region0: #{multi_head_attention.1}
  #allocation0 [shape = 'u32[]', space=smem, size = 0x4, offset = 0x4, fixed_abs, tag = 'smem constant byte address 0x4 - core index']
  #allocation1 [shape = 'u32[72,128]{1,0:T(1,128)}', space=vmem, size = 0x9000, scoped, tag = 'internal scratch']
  %s0 = inlined_call_operand.vmem [shape: bf16[16,128], index: 0, kind: input, shape index: {}]
  %s1 = inlined_call_operand.vmem [shape: bf16[128,128], index: 1, kind: input, shape index: {}]
  %s2 = inlined_call_operand.vmem [shape: f32[1,128], index: 2, kind: input, shape index: {}]
  %s3 = inlined_call_operand.vmem [shape: bf16[128,128], index: 3, kind: input, shape index: {}]
  %s4 = inlined_call_operand.vmem [shape: f32[1,128], index: 4, kind: input, shape index: {}]
  %s5 = inlined_call_operand.vmem [shape: f32[16,128], index: 5, kind: output, shape index: {}]
  %s6 = sld [smem:[#allocation0]]
  $region30: #{multi_head_attention.1} parent=0
    _
  %s8 = ssub.s32 1, %s6
  %s9 = scalar_select 0, %s8, %s6
  // Predicated region
  $region2: #{multi_head_attention.1} parent=0 // pred_check
    _
  $region3: #{multi_head_attention.1} parent=0 // pred_check_branch
    %11 = sbr.rel (0) target = $region5
  $region4: #{multi_head_attention.1} parent=0 // pred_region
    _
  $region5: #{multi_head_attention.1} parent=0 // pred_fallthru
    _
  // Predicated region
  $region6: #{multi_head_attention.1} parent=0 // pred_check
    _
  $region7: #{multi_head_attention.1} parent=0 // pred_check_branch
    %13 = sbr.rel (0) target = $region9
  $region8: #{multi_head_attention.1} parent=0 // pred_region
    _
  $region9: #{multi_head_attention.1} parent=0 // pred_fallthru
    _
  // Predicated region
  $region10: #{multi_head_attention.1} parent=0 // pred_check
    _
  $region11: #{multi_head_attention.1} parent=0 // pred_check_branch
    %15 = sbr.rel (0) target = $region13
  $region12: #{multi_head_attention.1} parent=0 // pred_region
    _
  $region13: #{multi_head_attention.1} parent=0 // pred_fallthru
    _
  // Predicated region
  $region14: #{multi_head_attention.1} parent=0 // pred_check
    _
  $region15: #{multi_head_attention.1} parent=0 // pred_check_branch
    %17 = sbr.rel (0) target = $region17
  $region16: #{multi_head_attention.1} parent=0 // pred_region
    _
  $region17: #{multi_head_attention.1} parent=0 // pred_fallthru
    _
  // Predicated region
  $region18: #{multi_head_attention.1} parent=0 // pred_check
    _
  $region19: #{multi_head_attention.1} parent=0 // pred_check_branch
    %19 = sbr.rel (0) target = $region21
  $region20: #{multi_head_attention.1} parent=0 // pred_region
    _
  $region21: #{multi_head_attention.1} parent=0 // pred_fallthru
    _
  %v20 = vld [vmem:[%s0] sm:$0xf]
  %v21 = vld [vmem:[%s0 + $0x4] sm:$0xf]
  %v22 = vld [vmem:[%s1] sm:$0xf]
  %v23 = vld [vmem:[%s1 + $0x4] sm:$0xf]
  %v24 = vld [vmem:[%s1 + $0x8] sm:$0xf]
  %v25 = vld [vmem:[%s1 + $0xc] sm:$0xf]
  %v26 = vld [vmem:[%s1 + $0x10] sm:$0xf]
  %v27 = vld [vmem:[%s1 + $0x14] sm:$0xf]
  %v28 = vld [vmem:[%s1 + $0x18] sm:$0xf]
  %v29 = vld [vmem:[%s1 + $0x1c] sm:$0xf]
  %v30 = vld [vmem:[%s1 + $0x20] sm:$0xf]
  %v31 = vld [vmem:[%s1 + $0x24] sm:$0xf]
  %v32 = vld [vmem:[%s1 + $0x28] sm:$0xf]
  %v33 = vld [vmem:[%s1 + $0x2c] sm:$0xf]
  %v34 = vld [vmem:[%s1 + $0x30] sm:$0xf]
  %v35 = vld [vmem:[%s1 + $0x34] sm:$0xf]
  %v36 = vld [vmem:[%s1 + $0x38] sm:$0xf]
  %v37 = vld [vmem:[%s1 + $0x3c] sm:$0xf]
  %v38 = vld [vmem:[%s2] sm:$0x1]
  %v40 = vperm.slane %v38, 0
  %v44 = vunpack.c.l.b16 %v20
  %v45 = vunpack.c.l.b16 %v21
  %v46 = vpack.c.b16 %v45, %v44
  %v64 = vunpack.c.l.b16 %v22
  %v65 = vunpack.c.l.b16 %v23
  %v66 = vunpack.c.l.b16 %v24
  %v67 = vunpack.c.l.b16 %v25
  %v68 = vunpack.c.l.b16 %v26
  %v69 = vunpack.c.l.b16 %v27
  %v70 = vunpack.c.l.b16 %v28
  %v71 = vunpack.c.l.b16 %v29
  %v72 = vunpack.c.l.b16 %v30
  %v73 = vunpack.c.l.b16 %v31
  %v74 = vunpack.c.l.b16 %v32
  %v75 = vunpack.c.l.b16 %v33
  %v76 = vunpack.c.l.b16 %v34
  %v77 = vunpack.c.l.b16 %v35
  %v78 = vunpack.c.l.b16 %v36
  %v79 = vunpack.c.l.b16 %v37
  %v80 = vpack.c.b16 %v65, %v64
  %v81 = vpack.c.b16 %v67, %v66
  %v82 = vpack.c.b16 %v69, %v68
  %v83 = vpack.c.b16 %v71, %v70
  %v84 = vpack.c.b16 %v73, %v72
  %v85 = vpack.c.b16 %v75, %v74
  %v86 = vpack.c.b16 %v77, %v76
  %v87 = vpack.c.b16 %v79, %v78
  %96 = vmatpush.bf16.msra.mxu0 %v87
  %97 = vmatpush.bf16.msra.mxu0 %v86
  %98 = vmatpush.bf16.msra.mxu0 %v85
  %99 = vmatpush.bf16.msra.mxu0 %v84
  %100 = vmatpush.bf16.msra.mxu0 %v83
  %101 = vmatpush.bf16.msra.mxu0 %v82
  %102 = vmatpush.bf16.msra.mxu0 %v81
  %103 = vmatpush.bf16.msra.mxu0 %v80
  %104 = vmatmul.bf16.gmra.mxu0 %v46
  %v105 = vpop.f32.mrf.mxu0
  %v106 = vadd.f32 %v40, %v105
  %v107 = vpop.f32.mrf.mxu0
  %v108 = vadd.f32 %v40, %v107
  %109 = vdwg.mxu0
  %v110 = vpack.c.bf16 %v108, %v106
  %v111 = vld [vmem:[%s3] sm:$0xf]
  %v112 = vld [vmem:[%s3 + $0x4] sm:$0xf]
  %v113 = vld [vmem:[%s3 + $0x8] sm:$0xf]
  %v114 = vld [vmem:[%s3 + $0xc] sm:$0xf]
  %v115 = vld [vmem:[%s3 + $0x10] sm:$0xf]
  %v116 = vld [vmem:[%s3 + $0x14] sm:$0xf]
  %v117 = vld [vmem:[%s3 + $0x18] sm:$0xf]
  %v118 = vld [vmem:[%s3 + $0x1c] sm:$0xf]
  %v119 = vld [vmem:[%s3 + $0x20] sm:$0xf]
  %v120 = vld [vmem:[%s3 + $0x24] sm:$0xf]
  %v121 = vld [vmem:[%s3 + $0x28] sm:$0xf]
  %v122 = vld [vmem:[%s3 + $0x2c] sm:$0xf]
  %v123 = vld [vmem:[%s3 + $0x30] sm:$0xf]
  %v124 = vld [vmem:[%s3 + $0x34] sm:$0xf]
  %v125 = vld [vmem:[%s3 + $0x38] sm:$0xf]
  %v126 = vld [vmem:[%s3 + $0x3c] sm:$0xf]
  %v127 = vld [vmem:[%s4] sm:$0x1]
  %v129 = vperm.slane %v127, 0
  %v147 = vunpack.c.l.b16 %v111
  %v148 = vunpack.c.l.b16 %v112
  %v149 = vunpack.c.l.b16 %v113
  %v150 = vunpack.c.l.b16 %v114
  %v151 = vunpack.c.l.b16 %v115
  %v152 = vunpack.c.l.b16 %v116
  %v153 = vunpack.c.l.b16 %v117
  %v154 = vunpack.c.l.b16 %v118
  %v155 = vunpack.c.l.b16 %v119
  %v156 = vunpack.c.l.b16 %v120
  %v157 = vunpack.c.l.b16 %v121
  %v158 = vunpack.c.l.b16 %v122
  %v159 = vunpack.c.l.b16 %v123
  %v160 = vunpack.c.l.b16 %v124
  %v161 = vunpack.c.l.b16 %v125
  %v162 = vunpack.c.l.b16 %v126
  %v163 = vpack.c.b16 %v148, %v147
  %v164 = vpack.c.b16 %v150, %v149
  %v165 = vpack.c.b16 %v152, %v151
  %v166 = vpack.c.b16 %v154, %v153
  %v167 = vpack.c.b16 %v156, %v155
  %v168 = vpack.c.b16 %v158, %v157
  %v169 = vpack.c.b16 %v160, %v159
  %v170 = vpack.c.b16 %v162, %v161
  %179 = vmatpush.bf16.msra.mxu0 %v170
  %180 = vmatpush.bf16.msra.mxu0 %v169
  %181 = vmatpush.bf16.msra.mxu0 %v168
  %182 = vmatpush.bf16.msra.mxu0 %v167
  %183 = vmatpush.bf16.msra.mxu0 %v166
  %184 = vmatpush.bf16.msra.mxu0 %v165
  %185 = vmatpush.bf16.msra.mxu0 %v164
  %186 = vmatpush.bf16.msra.mxu0 %v163
  %187 = vmatmul.bf16.gmra.mxu0 %v110
  %v188 = vpop.f32.mrf.mxu0
  %v189 = vadd.f32 %v129, %v188
  %v190 = vpop.f32.mrf.mxu0
  %v191 = vadd.f32 %v129, %v190
  %192 = vdwg.mxu0
  %193 = vst [vmem:[%s5] sm:$0xff] %v189
  %194 = vst [vmem:[%s5 + $0x8] sm:$0xff] %v191
  // Predicated region
  $region22: #{multi_head_attention.1} parent=0 // pred_check
    _
  $region23: #{multi_head_attention.1} parent=0 // pred_check_branch
    %196 = sbr.rel (0) target = $region25
  $region24: #{multi_head_attention.1} parent=0 // pred_region
    _
  $region25: #{multi_head_attention.1} parent=0 // pred_fallthru
    _
  // Predicated region
  $region26: #{multi_head_attention.1} parent=0 // pred_check
    _
  $region27: #{multi_head_attention.1} parent=0 // pred_check_branch
    %198 = sbr.rel (0) target = $region29
  $region28: #{multi_head_attention.1} parent=0 // pred_region
    _
  $region29: #{multi_head_attention.1} parent=0 // pred_fallthru
    _

</llo_original>
